<compile_context>
chip_gen: v7x
topology: tpu7x:2x2x1
jax: 0.10.0
libtpu: 0.0.40
codegen_flags: <defaults>
</compile_context>

<pallas_src>
import functools

import jax
import jax.numpy as jnp
from jax.experimental import pallas as pl
from jax.experimental.pallas import tpu as pltpu


def _round_up(n, m):
    return ((n + m - 1) // m) * m


def bdg_kernel(x_ref, w1_ref, b1_ref, wh_ref, bh_ref, out_ref, *, ng):
    x = x_ref[...]

    # h1 = relu(x @ W1 + b1)
    h1 = jnp.dot(x, w1_ref[...], preferred_element_type=jnp.float32) + b1_ref[...]
    h1 = jnp.maximum(h1, 0.0)

    # Single fused head matmul: (TB, H) @ (H, 3*ng) + (1, 3*ng)
    heads = jnp.dot(h1, wh_ref[...], preferred_element_type=jnp.float32) + bh_ref[...]

    # Whole-slab masked math instead of slice/concat (no lane shuffles).
    lane = jax.lax.broadcasted_iota(jnp.int32, heads.shape, dimension=1)
    is_w = lane < ng            # weight head lanes  -> softmax over gaussian dim
    is_v = lane >= 2 * ng       # var head lanes     -> relu
    # (remaining lanes = mean head -> identity)

    neg_inf = jnp.float32(-jnp.inf)
    logits = jnp.where(is_w, heads, neg_inf)
    m = jnp.max(logits, axis=-1, keepdims=True)
    e = jnp.exp(logits - m)                       # exp(-inf)=0 on non-weight lanes
    denom = jnp.sum(e, axis=-1, keepdims=True)
    weight = e / denom                            # exact division (correctness)

    out_ref[...] = jnp.where(is_w, weight,
                             jnp.where(is_v, jnp.maximum(heads, 0.0), heads))


def bdg_forward(x, params, *, tb=4096):
    """x: (B, input_dim) float32. Returns (weight, mean, var), each (B, ng)."""
    B, D = x.shape
    H = params["w1"].shape[1]
    ng = params["ww"].shape[1]

    # Fuse the three head weights / biases on the host (cheap, done once).
    w_heads = jnp.concatenate([params["ww"], params["wm"], params["wv"]], axis=1)  # (H, 3*ng)
    b_heads = jnp.concatenate([params["bw"], params["bm"], params["bv"]], axis=1)  # (1, 3*ng)

    # Batch tile: straight round-up-to-8 clamp; big default amortizes the
    # ~0.35us per-grid-step pipeline overhead.
    TB = min(_round_up(tb, 8), _round_up(B, 8))
    if TB >= B and B >= 16:
        # Whole batch fits in one tile: split in two so the "parallel" batch
        # axis has >=2 steps for v7x's two TensorCores.
        TB = _round_up(pl.cdiv(B, 2), 8)
    grid_b = pl.cdiv(B, TB)     # ragged last tile handled by Pallas masking

    flops = 2 * B * D * H + 2 * B * H * (3 * ng)
    bytes_accessed = 4 * (B * D + D * H + H + H * 3 * ng + 3 * ng + B * 3 * ng)
    cost = pl.CostEstimate(flops=flops, transcendentals=B * ng,
                           bytes_accessed=bytes_accessed)

    out = pl.pallas_call(
        functools.partial(bdg_kernel, ng=ng),
        out_shape=jax.ShapeDtypeStruct((B, 3 * ng), jnp.float32),
        grid=(grid_b,),
        in_specs=[
            pl.BlockSpec((TB, D), lambda i: (i, 0)),          # x tile (pipelined)
            pl.BlockSpec((D, H), lambda i: (0, 0)),           # w1  (VMEM-resident)
            pl.BlockSpec((1, H), lambda i: (0, 0)),           # b1
            pl.BlockSpec((H, 3 * ng), lambda i: (0, 0)),      # fused head weights
            pl.BlockSpec((1, 3 * ng), lambda i: (0, 0)),      # fused head biases
        ],
        out_specs=pl.BlockSpec((TB, 3 * ng), lambda i: (i, 0)),
        compiler_params=pltpu.CompilerParams(
            dimension_semantics=("parallel",),
            vmem_limit_bytes=48 * 1024 * 1024,
        ),
        cost_estimate=cost,
    )(x, params["w1"], params["b1"], w_heads, b_heads)

    # Downstream code that can consume the packed (B, 3*ng) slab should use
    # `out` directly; the split below exists only to match the module's API.
    return out[:, :ng], out[:, ng:2 * ng], out[:, 2 * ng:]


def init_params(key, input_dim, number_gaussian, hidden_dim):
    """Deterministic init mimicking nn.Linear (uniform +/-1/sqrt(fan_in)).
    Weights stored as (in, out); biases kept 2D (1, out) for TPU friendliness."""
    ks = jax.random.split(key, 8)

    def linear(kw, kb, fan_in, fan_out):
        bound = 1.0 / jnp.sqrt(jnp.float32(fan_in))
        w = jax.random.uniform(kw, (fan_in, fan_out), jnp.float32, -bound, bound)
        b = jax.random.uniform(kb, (1, fan_out), jnp.float32, -bound, bound)
        return w, b

    w1, b1 = linear(ks[0], ks[1], input_dim, hidden_dim)
    ww, bw = linear(ks[2], ks[3], hidden_dim, number_gaussian)
    wm, bm = linear(ks[4], ks[5], hidden_dim, number_gaussian)
    wv, bv = linear(ks[6], ks[7], hidden_dim, number_gaussian)
    return dict(w1=w1, b1=b1, ww=ww, bw=bw, wm=wm, bm=bm, wv=wv, bv=bv)


def reference_forward(x, p):
    h1 = jnp.maximum(x @ p["w1"] + p["b1"], 0.0)
    weight = jax.nn.softmax(h1 @ p["ww"] + p["bw"], axis=1)
    mean = h1 @ p["wm"] + p["bm"]
    var = jnp.maximum(h1 @ p["wv"] + p["bv"], 0.0)
    return weight, mean, var


if __name__ == "__main__":
    # Small shapes consistent with the module: batch=8, input_dim=4,
    # hidden_dim=32, number_gaussian=8.
    B, input_dim, hidden_dim, number_gaussian = 8, 4, 32, 8

    key = jax.random.PRNGKey(0)
    kx, kp = jax.random.split(key)
    x = jax.random.uniform(kx, (B, input_dim), jnp.float32)
    params = init_params(kp, input_dim, number_gaussian, hidden_dim)

    weight, mean, var = bdg_forward(x, params)
    jax.block_until_ready((weight, mean, var))

    # sanity-check against plain-JAX reference (exact softmax in kernel now).
    w_ref, m_ref, v_ref = reference_forward(x, params)
    assert jnp.allclose(weight, w_ref, atol=1e-5, rtol=1e-5)
    assert jnp.allclose(mean, m_ref, atol=1e-5, rtol=1e-5)
    assert jnp.allclose(var, v_ref, atol=1e-5, rtol=1e-5)

    print("KERNEL_OK")
</pallas_src>

<mosaic_0001>
module attributes {stable_mosaic.version = 11 : i64} {
  func.func @bdg_kernel(%arg0: i32, %arg1: memref<8x4xf32, #tpu.memory_space<vmem>>, %arg2: memref<4x32xf32, #tpu.memory_space<vmem>>, %arg3: memref<1x32xf32, #tpu.memory_space<vmem>>, %arg4: memref<32x24xf32, #tpu.memory_space<vmem>>, %arg5: memref<1x24xf32, #tpu.memory_space<vmem>>, %arg6: memref<8x24xf32, #tpu.memory_space<vmem>>) attributes {dimension_semantics = [#tpu.dimension_semantics<parallel>], iteration_bounds = array<i64: 1>, scalar_prefetch = 0 : i64, scratch_operands = 0 : i64, tpu.core_type = #tpu.core_type<tc>, window_params = [{transform_indices = @transform_0, window_bounds = array<i64: 8, 4>}, {pipeline_mode = #tpu.pipeline_mode<synchronous>, transform_indices = @transform_1, window_bounds = array<i64: 4, 32>}, {pipeline_mode = #tpu.pipeline_mode<synchronous>, transform_indices = @transform_2, window_bounds = array<i64: 1, 32>}, {pipeline_mode = #tpu.pipeline_mode<synchronous>, transform_indices = @transform_3, window_bounds = array<i64: 32, 24>}, {pipeline_mode = #tpu.pipeline_mode<synchronous>, transform_indices = @transform_4, window_bounds = array<i64: 1, 24>}, {transform_indices = @transform_5, window_bounds = array<i64: 8, 24>}]} {
    %c0 = arith.constant 0 : index
    %c0_0 = arith.constant 0 : index
    %0 = vector.load %arg1[%c0, %c0_0] : memref<8x4xf32, #tpu.memory_space<vmem>>, vector<8x4xf32>
    %c0_1 = arith.constant 0 : index
    %c0_2 = arith.constant 0 : index
    %1 = vector.load %arg2[%c0_1, %c0_2] : memref<4x32xf32, #tpu.memory_space<vmem>>, vector<4x32xf32>
    %cst = arith.constant dense<0.000000e+00> : vector<8x32xf32>
    %2 = tpu.matmul %0, %1, %cst {dimension_numbers = #tpu.dot_dimension_numbers<[1], [0], [0], [1], [0, 0, 1, 1], [], []>} : vector<8x4xf32>, vector<4x32xf32>, vector<8x32xf32> -> vector<8x32xf32>
    %c0_3 = arith.constant 0 : index
    %c0_4 = arith.constant 0 : index
    %3 = vector.load %arg3[%c0_3, %c0_4] : memref<1x32xf32, #tpu.memory_space<vmem>>, vector<1x32xf32>
    %4 = vector.broadcast %3 : vector<1x32xf32> to vector<8x32xf32>
    %5 = arith.addf %2, %4 : vector<8x32xf32>
    %cst_5 = arith.constant 0.000000e+00 : f32
    %6 = vector.broadcast %cst_5 : f32 to vector<8x32xf32>
    %7 = arith.maximumf %5, %6 : vector<8x32xf32>
    %c0_6 = arith.constant 0 : index
    %c0_7 = arith.constant 0 : index
    %8 = vector.load %arg4[%c0_6, %c0_7] : memref<32x24xf32, #tpu.memory_space<vmem>>, vector<32x24xf32>
    %cst_8 = arith.constant dense<0.000000e+00> : vector<8x24xf32>
    %9 = tpu.matmul %7, %8, %cst_8 {dimension_numbers = #tpu.dot_dimension_numbers<[1], [0], [0], [1], [0, 0, 1, 1], [], []>} : vector<8x32xf32>, vector<32x24xf32>, vector<8x24xf32> -> vector<8x24xf32>
    %c0_9 = arith.constant 0 : index
    %c0_10 = arith.constant 0 : index
    %10 = vector.load %arg5[%c0_9, %c0_10] : memref<1x24xf32, #tpu.memory_space<vmem>>, vector<1x24xf32>
    %11 = vector.broadcast %10 : vector<1x24xf32> to vector<8x24xf32>
    %12 = arith.addf %9, %11 : vector<8x24xf32>
    %13 = tpu.iota {dimensions = array<i32: 1>} : vector<8x24xi32>
    %c8_i32 = arith.constant 8 : i32
    %14 = vector.broadcast %c8_i32 : i32 to vector<8x24xi32>
    %15 = arith.cmpi slt, %13, %14 : vector<8x24xi32>
    %c16_i32 = arith.constant 16 : i32
    %16 = vector.broadcast %c16_i32 : i32 to vector<8x24xi32>
    %17 = arith.cmpi sge, %13, %16 : vector<8x24xi32>
    %cst_11 = arith.constant 0xFF800000 : f32
    %18 = vector.broadcast %cst_11 : f32 to vector<8x24xf32>
    %19 = arith.select %15, %12, %18 : vector<8x24xi1>, vector<8x24xf32>
    %cst_12 = arith.constant dense<0xFF800000> : vector<8xf32>
    %20 = vector.multi_reduction <maximumf>, %19, %cst_12 [1] : vector<8x24xf32> to vector<8xf32>
    %21 = vector.shape_cast %20 : vector<8xf32> to vector<8x1xf32>
    %22 = vector.broadcast %21 : vector<8x1xf32> to vector<8x24xf32>
    %23 = arith.subf %19, %22 : vector<8x24xf32>
    %24 = math.exp %23 : vector<8x24xf32>
    %cst_13 = arith.constant dense<0.000000e+00> : vector<8xf32>
    %25 = vector.multi_reduction <add>, %24, %cst_13 [1] : vector<8x24xf32> to vector<8xf32>
    %26 = vector.shape_cast %25 : vector<8xf32> to vector<8x1xf32>
    %27 = vector.broadcast %26 : vector<8x1xf32> to vector<8x24xf32>
    %28 = arith.divf %24, %27 : vector<8x24xf32>
    %cst_14 = arith.constant 0.000000e+00 : f32
    %29 = vector.broadcast %cst_14 : f32 to vector<8x24xf32>
    %30 = arith.maximumf %12, %29 : vector<8x24xf32>
    %31 = arith.select %17, %30, %12 : vector<8x24xi1>, vector<8x24xf32>
    %32 = arith.select %15, %28, %31 : vector<8x24xi1>, vector<8x24xf32>
    %c0_15 = arith.constant 0 : index
    %c0_16 = arith.constant 0 : index
    %33 = vector.load %arg6[%c0_15, %c0_16] : memref<8x24xf32, #tpu.memory_space<vmem>>, vector<8x24xf32>
    tpu.vector_store %arg6[%c0_15, %c0_16], %32 {strides = array<i32>} : memref<8x24xf32, #tpu.memory_space<vmem>>, vector<8x24xf32>,
    return
  }
  func.func @transform_0(%arg0: i32) -> (i32, i32) {
    %c0_i32 = arith.constant 0 : i32
    %c0_i32_0 = arith.constant 0 : i32
    return %arg0, %c0_i32 : i32, i32
  }
  func.func @transform_1(%arg0: i32) -> (i32, i32) {
    %c0_i32 = arith.constant 0 : i32
    %c0_i32_0 = arith.constant 0 : i32
    %c0_i32_1 = arith.constant 0 : i32
    return %c0_i32, %c0_i32_0 : i32, i32
  }
  func.func @transform_2(%arg0: i32) -> (i32, i32) {
    %c0_i32 = arith.constant 0 : i32
    %c0_i32_0 = arith.constant 0 : i32
    %c0_i32_1 = arith.constant 0 : i32
    return %c0_i32, %c0_i32_0 : i32, i32
  }
  func.func @transform_3(%arg0: i32) -> (i32, i32) {
    %c0_i32 = arith.constant 0 : i32
    %c0_i32_0 = arith.constant 0 : i32
    %c0_i32_1 = arith.constant 0 : i32
    return %c0_i32, %c0_i32_0 : i32, i32
  }
  func.func @transform_4(%arg0: i32) -> (i32, i32) {
    %c0_i32 = arith.constant 0 : i32
    %c0_i32_0 = arith.constant 0 : i32
    %c0_i32_1 = arith.constant 0 : i32
    return %c0_i32, %c0_i32_0 : i32, i32
  }
  func.func @transform_5(%arg0: i32) -> (i32, i32) {
    %c0_i32 = arith.constant 0 : i32
    %c0_i32_0 = arith.constant 0 : i32
    return %arg0, %c0_i32 : i32, i32
  }
}

</mosaic_0001>

<llo_original>
// kernel: tpu_custom_call.1
$region0: #{tpu_custom_call.1}
  #allocation0 [shape = 'u32[]', space=smem, size = 0x4, offset = 0x4, fixed_abs, tag = 'smem constant byte address 0x4 - core index']
  #allocation1 [shape = 'u32[144,128]{1,0:T(1,128)}', space=vmem, size = 0x12000, scoped, tag = 'internal scratch']
  %s0 = inlined_call_operand.vmem [shape: f32[8,4], index: 0, kind: input, shape index: {}]
  %s1 = inlined_call_operand.vmem [shape: f32[4,32], index: 1, kind: input, shape index: {}]
  %s2 = inlined_call_operand.vmem [shape: f32[1,32], index: 2, kind: input, shape index: {}]
  %s3 = inlined_call_operand.vmem [shape: f32[32,24], index: 3, kind: input, shape index: {}]
  %s4 = inlined_call_operand.vmem [shape: f32[1,24], index: 4, kind: input, shape index: {}]
  %s5 = inlined_call_operand.hbm [shape: f32[8,24], index: 5, kind: output, shape index: {}]
  %s6 = sld [smem:[#allocation0]]
  $region30: #{tpu_custom_call.1} parent=0
    _
  %s8 = ssub.s32 1, %s6
  %s9 = scalar_select 0, %s8, %s6
  $region1: #{tpu_custom_call.1} parent=0
    #allocation2 [shape = 'u8[4096]{0}', space=vmem, size = 0x1000, scoped, tag = 'output window, operand 0, single buffered']
    #allocation3 [shape = 's32[1]{0}', space=sflag, size = 0x4, scoped, tag = 'scoped memory for tpu_custom_call.1']
    %10 = vsyncpa [#allocation3], 0
    // Predicated region
    $region2: #{tpu_custom_call.1} parent=1 // pred_check
      _
    $region3: #{tpu_custom_call.1} parent=1 // pred_check_branch
      %12 = sbr.rel (0) target = $region5
    $region4: #{tpu_custom_call.1} parent=1 // pred_region
      _
    $region5: #{tpu_custom_call.1} parent=1 // pred_fallthru
      _
    // Predicated region
    $region6: #{tpu_custom_call.1} parent=1 // pred_check
      _
    $region7: #{tpu_custom_call.1} parent=1 // pred_check_branch
      %14 = sbr.rel (0) target = $region9
    $region8: #{tpu_custom_call.1} parent=1 // pred_region
      _
    $region9: #{tpu_custom_call.1} parent=1 // pred_fallthru
      _
    // Predicated region
    $region10: #{tpu_custom_call.1} parent=1 // pred_check
      _
    $region11: #{tpu_custom_call.1} parent=1 // pred_check_branch
      %16 = sbr.rel (0) target = $region13
    $region12: #{tpu_custom_call.1} parent=1 // pred_region
      _
    $region13: #{tpu_custom_call.1} parent=1 // pred_fallthru
      _
    // Predicated region
    $region14: #{tpu_custom_call.1} parent=1 // pred_check
      _
    $region15: #{tpu_custom_call.1} parent=1 // pred_check_branch
      %18 = sbr.rel (0) target = $region17
    $region16: #{tpu_custom_call.1} parent=1 // pred_region
      _
    $region17: #{tpu_custom_call.1} parent=1 // pred_fallthru
      _
    // Predicated region
    $region18: #{tpu_custom_call.1} parent=1 // pred_check
      _
    $region19: #{tpu_custom_call.1} parent=1 // pred_check_branch
      %20 = sbr.rel (0) target = $region21
    $region20: #{tpu_custom_call.1} parent=1 // pred_region
      _
    $region21: #{tpu_custom_call.1} parent=1 // pred_fallthru
      _
    %v21 = vld [vmem:[%s0] sm:$0xff]
    %v22 = vld [vmem:[%s1] sm:$0xf]
    %v23 = vld [vmem:[%s2] sm:$0x1]
    %v25 = vlaneseq
    %v26 = vshrl.u32 %v25, 7
    %v27 = vsub.s32 0, %v26
    %v28 = vrot.slane %v23, %v27
    %vm30 = vcmask 31744
    %v32 = vsel %vm30, %v21, 0
    %vm34 = vcmask 1043456
    %v36 = vsel %vm34, %v22, 0
    %38 = vmatprep.subr.mxu0 0.0
    %39 = vmatpush1.msra.mxu0 %v36
    %40 = vmatprep.subr.mxu0 0.0
    %41 = vmatpush1.msra.mxu0 0.0
    %42 = vmatprep.subr.mxu0 0.0
    %43 = vmatpush1.msra.mxu0 0.0
    %44 = vmatprep.subr.mxu0 0.0
    %45 = vmatpush1.msra.mxu0 0.0
    %46 = vmatprep.subr.mxu0 0.0
    %47 = vmatpush1.msra.mxu0 0.0
    %48 = vmatprep.subr.mxu0 0.0
    %49 = vmatpush1.msra.mxu0 0.0
    %50 = vmatprep.subr.mxu0 0.0
    %51 = vmatpush1.msra.mxu0 0.0
    %52 = vmatprep.subr.mxu0 0.0
    %53 = vmatpush1.msra.mxu0 0.0
    %54 = vmatprep.subr.mxu0 0.0
    %55 = vmatpush1.msra.mxu0 0.0
    %56 = vmatprep.subr.mxu0 0.0
    %57 = vmatpush1.msra.mxu0 0.0
    %58 = vmatprep.subr.mxu0 0.0
    %59 = vmatpush1.msra.mxu0 0.0
    %60 = vmatprep.subr.mxu0 0.0
    %61 = vmatpush1.msra.mxu0 0.0
    %62 = vmatprep.subr.mxu0 0.0
    %63 = vmatpush1.msra.mxu0 0.0
    %64 = vmatprep.subr.mxu0 0.0
    %65 = vmatpush1.msra.mxu0 0.0
    %66 = vmatprep.subr.mxu0 0.0
    %67 = vmatpush1.msra.mxu0 0.0
    %68 = vmatprep.subr.mxu0 0.0
    %69 = vmatpush1.msra.mxu0 0.0
    %70 = vmatprep.subr.mxu0 0.0
    %71 = vmatpush1.msra.mxu0 0.0
    %72 = vmatprep.subr.mxu0 0.0
    %73 = vmatpush1.msra.mxu0 0.0
    %74 = vmatprep.subr.mxu0 0.0
    %75 = vmatpush1.msra.mxu0 0.0
    %76 = vmatprep.subr.mxu0 0.0
    %77 = vmatpush1.msra.mxu0 0.0
    %78 = vmatprep.subr.mxu0 0.0
    %79 = vmatpush1.msra.mxu0 0.0
    %80 = vmatprep.subr.mxu0 0.0
    %81 = vmatpush1.msra.mxu0 0.0
    %82 = vmatprep.subr.mxu0 0.0
    %83 = vmatpush1.msra.mxu0 0.0
    %84 = vmatprep.subr.mxu0 0.0
    %85 = vmatpush1.msra.mxu0 0.0
    %86 = vmatprep.subr.mxu0 0.0
    %87 = vmatpush1.msra.mxu0 0.0
    %88 = vmatprep.subr.mxu0 0.0
    %89 = vmatpush1.msra.mxu0 0.0
    %90 = vmatprep.subr.mxu0 0.0
    %91 = vmatpush1.msra.mxu0 0.0
    %92 = vmatprep.subr.mxu0 0.0
    %93 = vmatpush1.msra.mxu0 0.0
    %94 = vmatprep.subr.mxu0 0.0
    %95 = vmatpush1.msra.mxu0 0.0
    %96 = vmatprep.subr.mxu0 0.0
    %97 = vmatpush1.msra.mxu0 0.0
    %98 = vmatprep.subr.mxu0 0.0
    %99 = vmatpush1.msra.mxu0 0.0
    %100 = vmatprep.subr.mxu0 0.0
    %101 = vmatpush1.msra.mxu0 0.0
    %102 = vmatprep.mubr.f32.mxu0 0.0
    %103 = vmatmul.mubr.f32.gmra.mrb[0].mxu0 %v32
    %v104 = vpop.f32.mrb[0].mxu0
    %v105 = vadd.f32 %v28, %v104
    %v106 = vpop.f32.mrb[0].mxu0
    %107 = vdwg.mxu0
    %v108 = vmax.f32 %v105, 0.0
    %v109 = vld [vmem:[%s3] sm:$0xff]
    %v110 = vld [vmem:[%s3 + $0x8] sm:$0xff]
    %v111 = vld [vmem:[%s3 + $0x10] sm:$0xff]
    %v112 = vld [vmem:[%s3 + $0x18] sm:$0xff]
    %v113 = vld [vmem:[%s4] sm:$0x1]
    %v115 = vlaneseq
    %v116 = vshrl.u32 %v115, 7
    %v117 = vsub.s32 0, %v116
    %v118 = vrot.slane %v113, %v117
    %vm120 = vcmask 261120
    %v122 = vsel %vm120, %v108, 0
    %124 = vmatprep.subr.mxu0 0.0
    %125 = vmatpush1.msra.mxu0 %v109
    %126 = vmatprep.subr.mxu0 0.0
    %127 = vmatpush1.msra.mxu0 %v110
    %128 = vmatprep.subr.mxu0 0.0
    %129 = vmatpush1.msra.mxu0 %v111
    %130 = vmatprep.subr.mxu0 0.0
    %131 = vmatpush1.msra.mxu0 %v112
    %132 = vmatprep.subr.mxu0 0.0
    %133 = vmatpush1.msra.mxu0 0.0
    %134 = vmatprep.subr.mxu0 0.0
    %135 = vmatpush1.msra.mxu0 0.0
    %136 = vmatprep.subr.mxu0 0.0
    %137 = vmatpush1.msra.mxu0 0.0
    %138 = vmatprep.subr.mxu0 0.0
    %139 = vmatpush1.msra.mxu0 0.0
    %140 = vmatprep.subr.mxu0 0.0
    %141 = vmatpush1.msra.mxu0 0.0
    %142 = vmatprep.subr.mxu0 0.0
    %143 = vmatpush1.msra.mxu0 0.0
    %144 = vmatprep.subr.mxu0 0.0
    %145 = vmatpush1.msra.mxu0 0.0
    %146 = vmatprep.subr.mxu0 0.0
    %147 = vmatpush1.msra.mxu0 0.0
    %148 = vmatprep.subr.mxu0 0.0
    %149 = vmatpush1.msra.mxu0 0.0
    %150 = vmatprep.subr.mxu0 0.0
    %151 = vmatpush1.msra.mxu0 0.0
    %152 = vmatprep.subr.mxu0 0.0
    %153 = vmatpush1.msra.mxu0 0.0
    %154 = vmatprep.subr.mxu0 0.0
    %155 = vmatpush1.msra.mxu0 0.0
    %156 = vmatprep.subr.mxu0 0.0
    %157 = vmatpush1.msra.mxu0 0.0
    %158 = vmatprep.subr.mxu0 0.0
    %159 = vmatpush1.msra.mxu0 0.0
    %160 = vmatprep.subr.mxu0 0.0
    %161 = vmatpush1.msra.mxu0 0.0
    %162 = vmatprep.subr.mxu0 0.0
    %163 = vmatpush1.msra.mxu0 0.0
    %164 = vmatprep.subr.mxu0 0.0
    %165 = vmatpush1.msra.mxu0 0.0
    %166 = vmatprep.subr.mxu0 0.0
    %167 = vmatpush1.msra.mxu0 0.0
    %168 = vmatprep.subr.mxu0 0.0
    %169 = vmatpush1.msra.mxu0 0.0
    %170 = vmatprep.subr.mxu0 0.0
    %171 = vmatpush1.msra.mxu0 0.0
    %172 = vmatprep.subr.mxu0 0.0
    %173 = vmatpush1.msra.mxu0 0.0
    %174 = vmatprep.subr.mxu0 0.0
    %175 = vmatpush1.msra.mxu0 0.0
    %176 = vmatprep.subr.mxu0 0.0
    %177 = vmatpush1.msra.mxu0 0.0
    %178 = vmatprep.subr.mxu0 0.0
    %179 = vmatpush1.msra.mxu0 0.0
    %180 = vmatprep.subr.mxu0 0.0
    %181 = vmatpush1.msra.mxu0 0.0
    %182 = vmatprep.subr.mxu0 0.0
    %183 = vmatpush1.msra.mxu0 0.0
    %184 = vmatprep.subr.mxu0 0.0
    %185 = vmatpush1.msra.mxu0 0.0
    %186 = vmatprep.subr.mxu0 0.0
    %187 = vmatpush1.msra.mxu0 0.0
    %188 = vmatprep.mubr.f32.mxu0 0.0
    %189 = vmatmul.mubr.f32.gmra.mrb[0].mxu0 %v122
    %v190 = vpop.f32.mrb[0].mxu0
    %v191 = vadd.f32 %v118, %v190
    %v192 = vpop.f32.mrb[0].mxu0
    %193 = vdwg.mxu0
    %v194 = vlaneseq
    %v195 = vand.u32 %v194, 127
    %vm196 = vcmp.lt.s32.totalorder %v195, 8
    %vm197 = vcmp.ge.s32.totalorder %v195, 16
    %v198 = vsel %vm196, %v191, -inf
    %vm199 = vcmask 195584
    %v200 = vsel %vm199, %v198, -inf
    %201 = vmax.xlane.f32.xlu0 %v200
    %v202 = vpop.xlane.xlu0 %201
    %v203 = vsub.f32 %v198, %v202
    %v204 = vmul.f32 %v203, 1.442695
    %v205 = vpow.pop %v204
    %v206 = vsel %vm199, %v205, 0.0
    %207 = vadd.xlane.f32.xlu0 %v206
    %v208 = vpop.xlane.xlu0 %207
    %v209 = vrcp.pop %v208
    %v210 = vmul.f32 %v205, %v209
    %v211 = vmax.f32 %v191, 0.0
    %v212 = vsel %vm197, %v211, %v191
    %v213 = vsel %vm196, %v210, %v212
    %214 = vst.msk [vmem:[#allocation2] sm:$0xff] %vm199, %v213
    // Predicated region
    $region22: #{tpu_custom_call.1} parent=1 // pred_check
      _
    $region23: #{tpu_custom_call.1} parent=1 // pred_check_branch
      %216 = sbr.rel (0) target = $region25
    $region24: #{tpu_custom_call.1} parent=1 // pred_region
      %s218 = ssub.s32 128, 128
      %219 = vsyncadd [#allocation3], %s218
      %s221 = sshll.u32 [#allocation2], 4
      %s222 = int_to_ptr.vmem [resolvable:$true] %s221
      %224 = dma.vmem_to_hbm [thread:$0]  %s222, 128, %s5, [#allocation3]
    $region25: #{tpu_custom_call.1} parent=1 // pred_fallthru
      _
    // Predicated region
    $region26: #{tpu_custom_call.1} parent=1 // pred_check
      _
    $region27: #{tpu_custom_call.1} parent=1 // pred_check_branch
      %226 = sbr.rel (0) target = $region29
    $region28: #{tpu_custom_call.1} parent=1 // pred_region
      %227 = dma.done [#allocation3], 128
    $region29: #{tpu_custom_call.1} parent=1 // pred_fallthru
      _
    %228 = vsyncpa [#allocation3], 1

</llo_original>
